<compile_context>
chip_gen: v7x
topology: tpu7x:2x2x1
jax: 0.10.0
libtpu: 0.0.40
codegen_flags: <defaults>
</compile_context>

<pallas_src>
import math

import jax
import jax.numpy as jnp
from jax import lax
from jax.experimental import pallas as pl
from jax.experimental.pallas import tpu as pltpu


# ---------------------------------------------------------------------------
# Pass 1: fused, time-independent input projection  XP = x @ W_ih_cat + b_ih
# ---------------------------------------------------------------------------
def _input_proj_kernel(x_ref, w_ref, b_ref, xp_ref, acc_sc):
    k = pl.program_id(0)

    @pl.when(k == 0)
    def _():
        acc_sc[...] = jnp.zeros_like(acc_sc)

    acc_sc[...] += jnp.dot(x_ref[...], w_ref[...],
                           preferred_element_type=jnp.float32)

    @pl.when(k == pl.num_programs(0) - 1)
    def _():
        xp_ref[...] = (acc_sc[...] + b_ref[...]).astype(xp_ref.dtype)


def _pick_k_tile(D, cap=512):
    if D <= cap:
        return D
    for tk in range(cap, 0, -128):          # multiples of 128 only
        if D % tk == 0:
            return tk
    # TODO(synk): very large D with no 128-multiple divisor -> single K block (VMEM heavy)
    return D


def _input_projection(xf, wih_cat, bih_row):
    L, D = xf.shape
    three_h = wih_cat.shape[1]
    tk = _pick_k_tile(D)
    nk = D // tk
    return pl.pallas_call(
        _input_proj_kernel,
        out_shape=jax.ShapeDtypeStruct((L, three_h), jnp.float32),
        grid_spec=pltpu.PrefetchScalarGridSpec(
            num_scalar_prefetch=0,
            grid=(nk,),
            in_specs=[
                pl.BlockSpec((L, tk), lambda k: (0, k)),
                pl.BlockSpec((tk, three_h), lambda k: (k, 0)),
                pl.BlockSpec((1, three_h), lambda k: (0, 0)),
            ],
            out_specs=pl.BlockSpec((L, three_h), lambda k: (0, 0)),
            scratch_shapes=[pltpu.VMEM((L, three_h), jnp.float32)],
        ),
        compiler_params=pltpu.CompilerParams(
            dimension_semantics=("arbitrary",)),   # K reduction -> accumulator resident
    )(xf, wih_cat, bih_row)


# ---------------------------------------------------------------------------
# Pass 2: serial GRU recurrence over time chunks + per-chunk Linear head
# ---------------------------------------------------------------------------
def _gru_recurrence_kernel(xp_ref, whh_ref, bhh_ref, wl_ref, bl_ref,
                           y_ref, h_sc, hist_sc):
    c = pl.program_id(0)

    @pl.when(c == 0)
    def _():
        h_sc[...] = jnp.zeros_like(h_sc)

    tc = xp_ref.shape[0]
    H = h_sc.shape[1]

    xp_chunk = xp_ref[...]                  # (Tc, 3H)  one load per chunk
    whh = whh_ref[...]                      # (H, 3H)   fused recurrent weights
    bhh = bhh_ref[...]                      # (1, 3H)

    h = h_sc[...]                           # (1, H) carry from previous chunk
    # Fully-unrolled serial scan over this chunk's Tc time steps (Tc is small/static).
    for t in range(tc):
        xp_t = xp_chunk[t:t + 1, :]                                       # (1, 3H)
        hp = jnp.dot(h, whh, preferred_element_type=jnp.float32) + bhh    # (1, 3H)
        r = jax.nn.sigmoid(xp_t[:, 0:H] + hp[:, 0:H])
        z = jax.nn.sigmoid(xp_t[:, H:2 * H] + hp[:, H:2 * H])
        n = jnp.tanh(xp_t[:, 2 * H:3 * H] + r * hp[:, 2 * H:3 * H])
        h = (1.0 - z) * n + z * h
        hist_sc[pl.ds(t, 1), :] = h
    h_sc[...] = h

    # Linear(hidden, 1) head hoisted out of the scan: one matmul per chunk.
    y = jnp.dot(hist_sc[...], wl_ref[...],
                preferred_element_type=jnp.float32) + bl_ref[...]
    y_ref[...] = y.astype(y_ref.dtype)


def _pick_time_chunk(L, cap=32):
    if L <= cap:
        return L
    best = None
    for cand in range(8, cap + 1, 8):        # keep chunk sublane-aligned
        if L % cand == 0:
            best = cand
    return best if best is not None else L


def _gru_scan(xp, whh_cat, bhh_row, w_lin_col, b_lin_row, H):
    L, three_h = xp.shape
    tc = _pick_time_chunk(L)
    nc = L // tc
    return pl.pallas_call(
        _gru_recurrence_kernel,
        out_shape=jax.ShapeDtypeStruct((L, 1), jnp.float32),
        grid_spec=pltpu.PrefetchScalarGridSpec(
            num_scalar_prefetch=0,
            grid=(nc,),
            in_specs=[
                pl.BlockSpec((tc, three_h), lambda c: (c, 0)),
                pl.BlockSpec((H, three_h), lambda c: (0, 0)),
                pl.BlockSpec((1, three_h), lambda c: (0, 0)),
                pl.BlockSpec((H, 1), lambda c: (0, 0)),
                pl.BlockSpec((1, 1), lambda c: (0, 0)),
            ],
            out_specs=pl.BlockSpec((tc, 1), lambda c: (c, 0)),
            scratch_shapes=[
                pltpu.VMEM((1, H), jnp.float32),    # h carried across chunks
                pltpu.VMEM((tc, H), jnp.float32),   # per-chunk hidden history
            ],
        ),
        compiler_params=pltpu.CompilerParams(
            dimension_semantics=("arbitrary",)),    # serial time recurrence
    )(xp, whh_cat, bhh_row, w_lin_col, b_lin_row)


# ---------------------------------------------------------------------------
# Forward wrapper (PyTorch-equivalent semantics) and pure-JAX reference
# ---------------------------------------------------------------------------
def gru_forward(x, params):
    """x: (B, ...).  Returns (B, 1) float32, matching GRU.forward."""
    w_ih, w_hh, b_ih, b_hh, w_lin, b_lin = params
    B = x.shape[0]
    xf = x.reshape(B, -1).astype(jnp.float32)       # (L, D): unbatched sequence, L = B
    H = w_hh.shape[1]
    three_h = 3 * H

    # PyTorch layouts -> fused kernel layouts (gate order r | z | n).
    wih_cat = jnp.transpose(w_ih)                   # (D, 3H)
    whh_cat = jnp.transpose(w_hh)                   # (H, 3H)
    bih_row = b_ih.reshape(1, three_h)
    bhh_row = b_hh.reshape(1, three_h)
    w_lin_col = jnp.transpose(w_lin)                # (H, 1)
    b_lin_row = b_lin.reshape(1, 1)

    xp = _input_projection(xf, wih_cat, bih_row)            # (L, 3H)
    y = _gru_scan(xp, whh_cat, bhh_row, w_lin_col, b_lin_row, H)   # (L, 1)
    return y


def gru_reference(x, params):
    """Pure-JAX reference implementing torch.nn.GRU + Linear exactly."""
    w_ih, w_hh, b_ih, b_hh, w_lin, b_lin = params
    B = x.shape[0]
    xf = x.reshape(B, -1).astype(jnp.float32)
    H = w_hh.shape[1]

    def step(h, xt):
        gi = xt @ w_ih.T + b_ih          # (3H,)
        gh = h @ w_hh.T + b_hh           # (3H,)
        r = jax.nn.sigmoid(gi[:H] + gh[:H])
        z = jax.nn.sigmoid(gi[H:2 * H] + gh[H:2 * H])
        n = jnp.tanh(gi[2 * H:] + r * gh[2 * H:])
        h_new = (1.0 - z) * n + z * h
        return h_new, h_new

    h0 = jnp.zeros((H,), jnp.float32)
    _, hs = lax.scan(step, h0, xf)       # (L, H)
    return hs @ w_lin.T + b_lin          # (L, 1)


def init_params(key, input_size, hidden_size):
    """PyTorch-style parameters: GRU weight_ih/weight_hh/biases + Linear(hidden, 1)."""
    stdv = 1.0 / math.sqrt(hidden_size)
    shapes = [
        (3 * hidden_size, input_size),   # weight_ih_l0 (r|z|n)
        (3 * hidden_size, hidden_size),  # weight_hh_l0
        (3 * hidden_size,),              # bias_ih_l0
        (3 * hidden_size,),              # bias_hh_l0
        (1, hidden_size),                # linear.weight
        (1,),                            # linear.bias
    ]
    keys = jax.random.split(key, len(shapes))
    return tuple(
        jax.random.uniform(k, s, jnp.float32, minval=-stdv, maxval=stdv)
        for k, s in zip(keys, shapes)
    )


if __name__ == "__main__":
    # Small stand-in shapes consistent with the module's forward:
    # original batch B=8 becomes the GRU sequence length after x.view(B, -1);
    # input_size = 1*8*8 = 64 (stand-in for 500*64); hidden_size = 32 (stand-in for 256).
    B, C, Hs, Ws = 8, 1, 8, 8
    D = C * Hs * Ws
    H = 32

    key = jax.random.PRNGKey(0)
    k_x, k_p = jax.random.split(key)
    x = jax.random.normal(k_x, (B, C, Hs, Ws), jnp.float32)
    params = init_params(k_p, D, H)

    out = jax.block_until_ready(gru_forward(x, params))
    ref = jax.block_until_ready(gru_reference(x, params))

    assert out.shape == (B, 1), out.shape
    assert jnp.allclose(out, ref, atol=1e-4, rtol=1e-4), float(jnp.max(jnp.abs(out - ref)))
    print("KERNEL_OK")
</pallas_src>

<mosaic_0001>
module attributes {stable_mosaic.version = 11 : i64} {
  func.func @_input_proj_kernel(%arg0: i32, %arg1: memref<8x64xf32, #tpu.memory_space<vmem>>, %arg2: memref<64x96xf32, #tpu.memory_space<vmem>>, %arg3: memref<1x96xf32, #tpu.memory_space<vmem>>, %arg4: memref<8x96xf32, #tpu.memory_space<vmem>>, %arg5: memref<8x96xf32, #tpu.memory_space<vmem>>) attributes {dimension_semantics = [#tpu.dimension_semantics<arbitrary>], iteration_bounds = array<i64: 1>, scalar_prefetch = 0 : i64, scratch_operands = 1 : i64, tpu.core_type = #tpu.core_type<tc>, window_params = [{transform_indices = @transform_0, window_bounds = array<i64: 8, 64>}, {transform_indices = @transform_1, window_bounds = array<i64: 64, 96>}, {pipeline_mode = #tpu.pipeline_mode<synchronous>, transform_indices = @transform_2, window_bounds = array<i64: 1, 96>}, {pipeline_mode = #tpu.pipeline_mode<synchronous>, transform_indices = @transform_3, window_bounds = array<i64: 8, 96>}]} {
    %c0_i32 = arith.constant 0 : i32
    %0 = arith.cmpi eq, %arg0, %c0_i32 : i32
    %1 = arith.extui %0 : i1 to i32
    %c0_i32_0 = arith.constant 0 : i32
    %2 = arith.cmpi ne, %1, %c0_i32_0 : i32
    scf.if %2 {
      %cst_10 = arith.constant 0.000000e+00 : f32
      %12 = vector.broadcast %cst_10 : f32 to vector<8x96xf32>
      %c0_11 = arith.constant 0 : index
      %c0_12 = arith.constant 0 : index
      %13 = vector.load %arg5[%c0_11, %c0_12] : memref<8x96xf32, #tpu.memory_space<vmem>>, vector<8x96xf32>
      tpu.vector_store %arg5[%c0_11, %c0_12], %12 {strides = array<i32>} : memref<8x96xf32, #tpu.memory_space<vmem>>, vector<8x96xf32>,
    } else {
    }
    %c0 = arith.constant 0 : index
    %c0_1 = arith.constant 0 : index
    %3 = vector.load %arg5[%c0, %c0_1] : memref<8x96xf32, #tpu.memory_space<vmem>>, vector<8x96xf32>
    %c0_2 = arith.constant 0 : index
    %c0_3 = arith.constant 0 : index
    %4 = vector.load %arg1[%c0_2, %c0_3] : memref<8x64xf32, #tpu.memory_space<vmem>>, vector<8x64xf32>
    %c0_4 = arith.constant 0 : index
    %c0_5 = arith.constant 0 : index
    %5 = vector.load %arg2[%c0_4, %c0_5] : memref<64x96xf32, #tpu.memory_space<vmem>>, vector<64x96xf32>
    %cst = arith.constant dense<0.000000e+00> : vector<8x96xf32>
    %6 = tpu.matmul %4, %5, %cst {dimension_numbers = #tpu.dot_dimension_numbers<[1], [0], [0], [1], [0, 0, 1, 1], [], []>} : vector<8x64xf32>, vector<64x96xf32>, vector<8x96xf32> -> vector<8x96xf32>
    %7 = arith.addf %3, %6 : vector<8x96xf32>
    %c0_6 = arith.constant 0 : index
    %c0_7 = arith.constant 0 : index
    %8 = vector.load %arg5[%c0_6, %c0_7] : memref<8x96xf32, #tpu.memory_space<vmem>>, vector<8x96xf32>
    tpu.vector_store %arg5[%c0_6, %c0_7], %7 {strides = array<i32>} : memref<8x96xf32, #tpu.memory_space<vmem>>, vector<8x96xf32>,
    %c0_i32_8 = arith.constant 0 : i32
    %9 = arith.cmpi eq, %arg0, %c0_i32_8 : i32
    %10 = arith.extui %9 : i1 to i32
    %c0_i32_9 = arith.constant 0 : i32
    %11 = arith.cmpi ne, %10, %c0_i32_9 : i32
    scf.if %11 {
      %c0_10 = arith.constant 0 : index
      %c0_11 = arith.constant 0 : index
      %12 = vector.load %arg5[%c0_10, %c0_11] : memref<8x96xf32, #tpu.memory_space<vmem>>, vector<8x96xf32>
      %c0_12 = arith.constant 0 : index
      %c0_13 = arith.constant 0 : index
      %13 = vector.load %arg3[%c0_12, %c0_13] : memref<1x96xf32, #tpu.memory_space<vmem>>, vector<1x96xf32>
      %14 = vector.broadcast %13 : vector<1x96xf32> to vector<8x96xf32>
      %15 = arith.addf %12, %14 : vector<8x96xf32>
      %c0_14 = arith.constant 0 : index
      %c0_15 = arith.constant 0 : index
      %16 = vector.load %arg4[%c0_14, %c0_15] : memref<8x96xf32, #tpu.memory_space<vmem>>, vector<8x96xf32>
      tpu.vector_store %arg4[%c0_14, %c0_15], %15 {strides = array<i32>} : memref<8x96xf32, #tpu.memory_space<vmem>>, vector<8x96xf32>,
    } else {
    }
    return
  }
  func.func @transform_0(%arg0: i32) -> (i32, i32) {
    %c0_i32 = arith.constant 0 : i32
    %c0_i32_0 = arith.constant 0 : i32
    return %c0_i32, %arg0 : i32, i32
  }
  func.func @transform_1(%arg0: i32) -> (i32, i32) {
    %c0_i32 = arith.constant 0 : i32
    %c0_i32_0 = arith.constant 0 : i32
    return %arg0, %c0_i32 : i32, i32
  }
  func.func @transform_2(%arg0: i32) -> (i32, i32) {
    %c0_i32 = arith.constant 0 : i32
    %c0_i32_0 = arith.constant 0 : i32
    %c0_i32_1 = arith.constant 0 : i32
    return %c0_i32, %c0_i32_0 : i32, i32
  }
  func.func @transform_3(%arg0: i32) -> (i32, i32) {
    %c0_i32 = arith.constant 0 : i32
    %c0_i32_0 = arith.constant 0 : i32
    %c0_i32_1 = arith.constant 0 : i32
    return %c0_i32, %c0_i32_0 : i32, i32
  }
}

</mosaic_0001>

<llo_original>
// kernel: tpu_custom_call.1
$region0: #{tpu_custom_call.1}
  #allocation0 [shape = 'u32[]', space=smem, size = 0x4, offset = 0x4, fixed_abs, tag = 'smem constant byte address 0x4 - core index']
  #allocation1 [shape = 'u32[144,128]{1,0:T(1,128)}', space=vmem, size = 0x12000, scoped, tag = 'internal scratch']
  #allocation2 [shape = 'f32[8,96]{1,0:T(8,128)}', space=vmem, size = 0x1000, scoped, tag = 'scratch operand']
  %s0 = inlined_call_operand.hbm [shape: f32[8,64], index: 0, kind: input, shape index: {}]
  %s1 = inlined_call_operand.hbm [shape: f32[64,96], index: 1, kind: input, shape index: {}]
  %s2 = inlined_call_operand.vmem [shape: f32[1,96], index: 2, kind: input, shape index: {}]
  %s3 = inlined_call_operand.hbm [shape: f32[8,96], index: 3, kind: output, shape index: {}]
  %s4 = sld [smem:[#allocation0]]
  $region38: #{tpu_custom_call.1} parent=0
    _
  %s6 = ssub.s32 1, %s4
  %s7 = scalar_select 0, %s6, %s4
  $region1: #{tpu_custom_call.1} parent=0
    #allocation3 [shape = 'u8[4096]{0}', space=vmem, size = 0x1000, scoped, tag = 'input window, operand 0, single buffered']
    #allocation4 [shape = 's32[1]{0}', space=sflag, size = 0x4, scoped, tag = 'scoped memory for tpu_custom_call.1']
    #allocation5 [shape = 's32[1]{0}', space=sflag, size = 0x4, scoped, tag = 'scoped memory for tpu_custom_call.1']
    #allocation6 [shape = 'u8[32768]{0}', space=vmem, size = 0x8000, scoped, tag = 'input window, operand 1, single buffered']
    #allocation7 [shape = 's32[1]{0}', space=sflag, size = 0x4, scoped, tag = 'scoped memory for tpu_custom_call.1']
    #allocation8 [shape = 'u8[4096]{0}', space=vmem, size = 0x1000, scoped, tag = 'output window, operand 0, single buffered']
    %8 = vsyncpa [#allocation4], 0
    %9 = vsyncpa [#allocation7], 0
    %10 = vsyncpa [#allocation5], 0
    // Predicated region
    $region2: #{tpu_custom_call.1} parent=1 // pred_check
      _
    $region3: #{tpu_custom_call.1} parent=1 // pred_check_branch
      %12 = sbr.rel (0) target = $region5
    $region4: #{tpu_custom_call.1} parent=1 // pred_region
      %s14 = ssub.s32 128, 128
      %15 = vsyncadd [#allocation4], %s14
      %s17 = sshll.u32 [#allocation3], 4
      %s18 = int_to_ptr.vmem [resolvable:$true] %s17
      %20 = dma.hbm_to_vmem [thread:$0]  %s0, 128, %s18, [#allocation4]
    $region5: #{tpu_custom_call.1} parent=1 // pred_fallthru
      _
    // Predicated region
    $region6: #{tpu_custom_call.1} parent=1 // pred_check
      _
    $region7: #{tpu_custom_call.1} parent=1 // pred_check_branch
      %22 = sbr.rel (0) target = $region9
    $region8: #{tpu_custom_call.1} parent=1 // pred_region
      %s24 = ssub.s32 1024, 1024
      %25 = vsyncadd [#allocation7], %s24
      %s26 = sshll.u32 [#allocation6], 4
      %s27 = int_to_ptr.vmem [resolvable:$true] %s26
      %32 = dma.hbm_to_vmem [thread:$0]  %s1, 1024, %s27, [#allocation7], 128, 128, 8
    $region9: #{tpu_custom_call.1} parent=1 // pred_fallthru
      _
    // Predicated region
    $region10: #{tpu_custom_call.1} parent=1 // pred_check
      _
    $region11: #{tpu_custom_call.1} parent=1 // pred_check_branch
      %34 = sbr.rel (0) target = $region13
    $region12: #{tpu_custom_call.1} parent=1 // pred_region
      _
    $region13: #{tpu_custom_call.1} parent=1 // pred_fallthru
      _
    // Predicated region
    $region14: #{tpu_custom_call.1} parent=1 // pred_check
      _
    $region15: #{tpu_custom_call.1} parent=1 // pred_check_branch
      %36 = sbr.rel (0) target = $region17
    $region16: #{tpu_custom_call.1} parent=1 // pred_region
      %37 = dma.done [#allocation4], 128
    $region17: #{tpu_custom_call.1} parent=1 // pred_fallthru
      _
    // Predicated region
    $region18: #{tpu_custom_call.1} parent=1 // pred_check
      _
    $region19: #{tpu_custom_call.1} parent=1 // pred_check_branch
      %39 = sbr.rel (0) target = $region21
    $region20: #{tpu_custom_call.1} parent=1 // pred_region
      %40 = dma.done [#allocation7], 1024
    $region21: #{tpu_custom_call.1} parent=1 // pred_fallthru
      _
    %p41 = scmp.eq.s32.totalorder 0, 0
    // Predicated region
    $region22: #{tpu_custom_call.1} parent=1 // pred_check
      %p42 = pneg %p41
    $region23: #{tpu_custom_call.1} parent=1 // pred_check_branch
      %44 = sbr.rel (%p42) target = $region25
    $region24: #{tpu_custom_call.1} parent=1 // pred_region
      %vm45 = vcmask 785408
      %46 = vst.msk [vmem:[#allocation2] sm:$0xff] %vm45, 0.0
    $region25: #{tpu_custom_call.1} parent=1 // pred_fallthru
      _
    %v47 = vld [vmem:[#allocation2] sm:$0xff]
    %v48 = vld [vmem:[#allocation3] sm:$0xff]
    %v49 = vld [vmem:[#allocation6] sm:$0xff]
    %v50 = vld [vmem:[#allocation6 + $0x8] sm:$0xff]
    %v51 = vld [vmem:[#allocation6 + $0x10] sm:$0xff]
    %v52 = vld [vmem:[#allocation6 + $0x18] sm:$0xff]
    %v53 = vld [vmem:[#allocation6 + $0x20] sm:$0xff]
    %v54 = vld [vmem:[#allocation6 + $0x28] sm:$0xff]
    %v55 = vld [vmem:[#allocation6 + $0x30] sm:$0xff]
    %v56 = vld [vmem:[#allocation6 + $0x38] sm:$0xff]
    %vm57 = vcmask 523264
    %v59 = vsel %vm57, %v48, 0
    %61 = vmatprep.subr.mxu0 0.0
    %62 = vmatpush1.msra.mxu0 %v49
    %63 = vmatprep.subr.mxu0 0.0
    %64 = vmatpush1.msra.mxu0 %v50
    %65 = vmatprep.subr.mxu0 0.0
    %66 = vmatpush1.msra.mxu0 %v51
    %67 = vmatprep.subr.mxu0 0.0
    %68 = vmatpush1.msra.mxu0 %v52
    %69 = vmatprep.subr.mxu0 0.0
    %70 = vmatpush1.msra.mxu0 %v53
    %71 = vmatprep.subr.mxu0 0.0
    %72 = vmatpush1.msra.mxu0 %v54
    %73 = vmatprep.subr.mxu0 0.0
    %74 = vmatpush1.msra.mxu0 %v55
    %75 = vmatprep.subr.mxu0 0.0
    %76 = vmatpush1.msra.mxu0 %v56
    %77 = vmatprep.subr.mxu0 0.0
    %78 = vmatpush1.msra.mxu0 0.0
    %79 = vmatprep.subr.mxu0 0.0
    %80 = vmatpush1.msra.mxu0 0.0
    %81 = vmatprep.subr.mxu0 0.0
    %82 = vmatpush1.msra.mxu0 0.0
    %83 = vmatprep.subr.mxu0 0.0
    %84 = vmatpush1.msra.mxu0 0.0
    %85 = vmatprep.subr.mxu0 0.0
    %86 = vmatpush1.msra.mxu0 0.0
    %87 = vmatprep.subr.mxu0 0.0
    %88 = vmatpush1.msra.mxu0 0.0
    %89 = vmatprep.subr.mxu0 0.0
    %90 = vmatpush1.msra.mxu0 0.0
    %91 = vmatprep.subr.mxu0 0.0
    %92 = vmatpush1.msra.mxu0 0.0
    %93 = vmatprep.subr.mxu0 0.0
    %94 = vmatpush1.msra.mxu0 0.0
    %95 = vmatprep.subr.mxu0 0.0
    %96 = vmatpush1.msra.mxu0 0.0
    %97 = vmatprep.subr.mxu0 0.0
    %98 = vmatpush1.msra.mxu0 0.0
    %99 = vmatprep.subr.mxu0 0.0
    %100 = vmatpush1.msra.mxu0 0.0
    %101 = vmatprep.subr.mxu0 0.0
    %102 = vmatpush1.msra.mxu0 0.0
    %103 = vmatprep.subr.mxu0 0.0
    %104 = vmatpush1.msra.mxu0 0.0
    %105 = vmatprep.subr.mxu0 0.0
    %106 = vmatpush1.msra.mxu0 0.0
    %107 = vmatprep.subr.mxu0 0.0
    %108 = vmatpush1.msra.mxu0 0.0
    %109 = vmatprep.subr.mxu0 0.0
    %110 = vmatpush1.msra.mxu0 0.0
    %111 = vmatprep.subr.mxu0 0.0
    %112 = vmatpush1.msra.mxu0 0.0
    %113 = vmatprep.subr.mxu0 0.0
    %114 = vmatpush1.msra.mxu0 0.0
    %115 = vmatprep.subr.mxu0 0.0
    %116 = vmatpush1.msra.mxu0 0.0
    %117 = vmatprep.subr.mxu0 0.0
    %118 = vmatpush1.msra.mxu0 0.0
    %119 = vmatprep.subr.mxu0 0.0
    %120 = vmatpush1.msra.mxu0 0.0
    %121 = vmatprep.subr.mxu0 0.0
    %122 = vmatpush1.msra.mxu0 0.0
    %123 = vmatprep.subr.mxu0 0.0
    %124 = vmatpush1.msra.mxu0 0.0
    %125 = vmatprep.mubr.f32.mxu0 0.0
    %126 = vmatmul.mubr.f32.gmra.mrb[0].mxu0 %v59
    %v127 = vpop.f32.mrb[0].mxu0
    %v128 = vadd.f32 0.0, %v127
    %v129 = vpop.f32.mrb[0].mxu0
    %130 = vdwg.mxu0
    %v131 = vadd.f32 %v47, %v128
    %vm132 = vcmask 785408
    %133 = vst.msk [vmem:[#allocation2] sm:$0xff] %vm132, %v131
    // Predicated region
    $region26: #{tpu_custom_call.1} parent=1 // pred_check
      %p134 = pneg %p41
    $region27: #{tpu_custom_call.1} parent=1 // pred_check_branch
      %136 = sbr.rel (%p134) target = $region29
    $region28: #{tpu_custom_call.1} parent=1 // pred_region
      %v137 = vld [vmem:[#allocation2] sm:$0xff]
      %v138 = vld [vmem:[%s2] sm:$0x1]
      %v140 = vlaneseq
      %v141 = vshrl.u32 %v140, 7
      %v142 = vsub.s32 0, %v141
      %v143 = vrot.slane %v138, %v142
      %v145 = vadd.f32 %v137, %v143
      %146 = vst.msk [vmem:[#allocation8] sm:$0xff] %vm132, %v145
    $region29: #{tpu_custom_call.1} parent=1 // pred_fallthru
      _
    // Predicated region
    $region30: #{tpu_custom_call.1} parent=1 // pred_check
      _
    $region31: #{tpu_custom_call.1} parent=1 // pred_check_branch
      %148 = sbr.rel (0) target = $region33
    $region32: #{tpu_custom_call.1} parent=1 // pred_region
      %s150 = ssub.s32 128, 128
      %151 = vsyncadd [#allocation5], %s150
      %s153 = sshll.u32 [#allocation8], 4
      %s154 = int_to_ptr.vmem [resolvable:$true] %s153
      %156 = dma.vmem_to_hbm [thread:$0]  %s154, 128, %s3, [#allocation5]
    $region33: #{tpu_custom_call.1} parent=1 // pred_fallthru
      _
    // Predicated region
    $region34: #{tpu_custom_call.1} parent=1 // pred_check
      _
    $region35: #{tpu_custom_call.1} parent=1 // pred_check_branch
      %158 = sbr.rel (0) target = $region37
    $region36: #{tpu_custom_call.1} parent=1 // pred_region
      %159 = dma.done [#allocation5], 128
    $region37: #{tpu_custom_call.1} parent=1 // pred_fallthru
      _
    %160 = vsyncpa [#allocation4], 1
    %161 = vsyncpa [#allocation7], 1
    %162 = vsyncpa [#allocation5], 1

</llo_original>
